<compile_context>
chip_gen: v6e
topology: v6e:2x2x1
jax: 0.10.0
libtpu: 0.0.40
codegen_flags: <defaults>
</compile_context>

<pallas_src>
import jax
import jax.numpy as jnp
from jax.experimental import pallas as pl
from jax.experimental.pallas import tpu as pltpu


def _vmem_capacity_bytes():
    """Physical VMEM per core, with a conservative (v7x per-TC) fallback."""
    try:
        cap = getattr(pltpu.get_tpu_info(), "vmem_capacity_bytes", None)
        if cap:
            return int(cap)
    except Exception:
        pass
    return 64 << 20


def _pick_block_b(B, N, C, itemsize, budget_bytes):
    """Largest divisor of B whose double-buffered output block fits the budget.

    Prefer >= 2 grid steps (v7x megacore) only when splitting keeps the
    per-step block >= ~2 MiB, so 1-TC chips never pay step overhead for it.
    """
    per_batch = (N + 1) * C * itemsize
    divisors = [d for d in range(1, B + 1) if B % d == 0]
    fitting = [d for d in divisors if 2 * d * per_batch <= budget_bytes]
    if not fitting:
        return 1
    best = max(fitting)
    if best == B:  # grid would be a single step; split only if blocks stay big
        floor_bytes = 2 << 20
        two_plus = [d for d in fitting if B // d >= 2 and d * per_batch >= floor_bytes]
        if two_plus:
            return max(two_plus)
    return best


def _add_distill_token_kernel(tok_ref, x_hbm, o_ref, dma_sem):
    # tok_ref: (1, 1, C) VMEM (resident)   x_hbm: (B, N, C) HBM (pl.ANY)
    # o_ref:  (TB, N+1, C) VMEM output block for this grid step.
    tb, n_plus_1, c = o_ref.shape
    n = n_plus_1 - 1
    b0 = pl.multiple_of(pl.program_id(0) * tb, tb)

    # Bulk copy: x rows for this batch block -> output rows 1..N.  The DMA
    # handles the +1 sequence offset in its address, keeping the core path
    # free of sublane rotates and masked stores.
    cp = pltpu.make_async_copy(
        x_hbm.at[pl.ds(b0, tb)],          # (tb, N, C) HBM window
        o_ref.at[:, pl.ds(1, n), :],      # (tb, N, C) VMEM window at row 1
        dma_sem,
    )
    cp.start()

    # Tiny aligned write: row 0 of every sequence gets the distill token.
    o_ref[:, 0:1, :] = jnp.broadcast_to(tok_ref[...], (tb, 1, c)).astype(o_ref.dtype)

    cp.wait()


def add_distill_token(x, cls_token, *, block_b=None):
    """x: (B, N, C); cls_token: (1, 1, C) parameter -> (B, N+1, C)."""
    B, N, C = x.shape
    assert cls_token.shape == (1, 1, C)
    itemsize = jnp.dtype(x.dtype).itemsize

    cap = _vmem_capacity_bytes()
    budget = min(cap // 4, 24 << 20)

    if block_b is None:
        block_b = _pick_block_b(B, N, C, itemsize, budget)
    else:
        # Graceful fallback: snap to the largest divisor of B that is <= block_b.
        block_b = max(d for d in range(1, min(block_b, B) + 1) if B % d == 0)

    grid = (B // block_b,)

    block_out_bytes = block_b * (N + 1) * C * itemsize
    # Double-buffered output block + (tiny) token block + margin; never exceed
    # physical VMEM (keeps v7x's 64 MiB per-TC safe).
    vmem_limit = max(2 * block_out_bytes + (4 << 20), 16 << 20)
    vmem_limit = int(min(vmem_limit, cap))

    return pl.pallas_call(
        _add_distill_token_kernel,
        out_shape=jax.ShapeDtypeStruct((B, N + 1, C), x.dtype),
        grid_spec=pltpu.PrefetchScalarGridSpec(
            num_scalar_prefetch=0,
            grid=grid,
            in_specs=[
                # cls_token: same tiny block every step (stays resident in VMEM).
                pl.BlockSpec((1, 1, C), lambda b: (0, 0, 0)),
                # x: raw HBM ref; the kernel DMAs the batch window it needs.
                pl.BlockSpec(memory_space=pl.ANY),
            ],
            out_specs=pl.BlockSpec((block_b, N + 1, C), lambda b: (b, 0, 0)),
            scratch_shapes=[pltpu.SemaphoreType.DMA],
        ),
        compiler_params=pltpu.CompilerParams(
            dimension_semantics=("parallel",),
            vmem_limit_bytes=vmem_limit,
        ),
    )(cls_token, x)


def add_distill_token_ref(x, cls_token):
    """Pure-JAX reference mirroring the PyTorch forward exactly."""
    B, _, C = x.shape
    tok = jnp.broadcast_to(cls_token, (B, 1, C))
    return jnp.concatenate([tok, x], axis=1)


if __name__ == "__main__":
    # Small shapes; channel axis kept a multiple of 128 so stores stay
    # lane-dense (module default is dim=768, also a multiple of 128).
    B, N, C = 2, 8, 128

    key = jax.random.PRNGKey(0)
    kx, kt = jax.random.split(key)
    x = jax.random.normal(kx, (B, N, C), dtype=jnp.float32)
    # PyTorch initializes cls_token to zeros; use a non-trivial value here so
    # the concat path is actually exercised.
    cls_token = 0.1 * jax.random.normal(kt, (1, 1, C), dtype=jnp.float32)

    out = jax.block_until_ready(add_distill_token(x, cls_token))
    ref = add_distill_token_ref(x, cls_token)

    assert out.shape == (B, N + 1, C)
    assert bool(jnp.array_equal(out, ref)), "mismatch vs reference"

    print("KERNEL_OK")
</pallas_src>

<mosaic_0001>
module attributes {stable_mosaic.version = 11 : i64} {
  func.func @_add_distill_token_kernel(%arg0: i32, %arg1: memref<1x1x128xf32, #tpu.memory_space<vmem>>, %arg2: memref<2x8x128xf32, #tpu.memory_space<any>>, %arg3: memref<2x9x128xf32, #tpu.memory_space<vmem>>, %arg4: memref<!tpu.dma_semaphore, #tpu.memory_space<semaphore_mem>>) attributes {dimension_semantics = [#tpu.dimension_semantics<parallel>], iteration_bounds = array<i64: 1>, scalar_prefetch = 0 : i64, scratch_operands = 1 : i64, tpu.core_type = #tpu.core_type<tc>, window_params = [{pipeline_mode = #tpu.pipeline_mode<synchronous>, transform_indices = @transform_0, window_bounds = array<i64: 1, 1, 128>}, {}, {transform_indices = @transform_2, window_bounds = array<i64: 2, 9, 128>}]} {
    %c2_i32 = arith.constant 2 : i32
    %0 = arith.muli %arg0, %c2_i32 : i32
    %1 = tpu.assume_multiple %0, 2 : i32
    %c0_i32 = arith.constant 0 : i32
    %c0_i32_0 = arith.constant 0 : i32
    %2 = tpu.memref_slice %arg2[%1, %c0_i32, %c0_i32_0] : memref<2x8x128xf32, #tpu.memory_space<any>> -> memref<2x8x128xf32, #tpu.memory_space<any>>
    %c0_i32_1 = arith.constant 0 : i32
    %c1_i32 = arith.constant 1 : i32
    %c0_i32_2 = arith.constant 0 : i32
    %3 = tpu.memref_slice %arg3[%c0_i32_1, %c1_i32, %c0_i32_2] : memref<2x9x128xf32, #tpu.memory_space<vmem>> -> memref<2x8x128xf32, #tpu.memory_space<vmem>>
    tpu.enqueue_dma source(%2 : memref<2x8x128xf32, #tpu.memory_space<any>>) target(%3 : memref<2x8x128xf32, #tpu.memory_space<vmem>>) target_semaphore(%arg4 : memref<!tpu.dma_semaphore, #tpu.memory_space<semaphore_mem>>)
    %c0 = arith.constant 0 : index
    %c0_3 = arith.constant 0 : index
    %c0_4 = arith.constant 0 : index
    %4 = vector.load %arg1[%c0, %c0_3, %c0_4] : memref<1x1x128xf32, #tpu.memory_space<vmem>>, vector<1x1x128xf32>
    %5 = vector.shape_cast %4 : vector<1x1x128xf32> to vector<1x1x128xf32>
    %6 = vector.broadcast %5 : vector<1x1x128xf32> to vector<2x1x128xf32>
    %c0_5 = arith.constant 0 : index
    %c0_6 = arith.constant 0 : index
    %c0_7 = arith.constant 0 : index
    %7 = vector.load %arg3[%c0_5, %c0_6, %c0_7] : memref<2x9x128xf32, #tpu.memory_space<vmem>>, vector<2x1x128xf32>
    tpu.vector_store %arg3[%c0_5, %c0_6, %c0_7], %6 {strides = array<i32>} : memref<2x9x128xf32, #tpu.memory_space<vmem>>, vector<2x1x128xf32>,
    %c0_i32_8 = arith.constant 0 : i32
    %c0_i32_9 = arith.constant 0 : i32
    %8 = tpu.memref_slice %arg2[%1, %c0_i32_8, %c0_i32_9] : memref<2x8x128xf32, #tpu.memory_space<any>> -> memref<2x8x128xf32, #tpu.memory_space<any>>
    %c0_i32_10 = arith.constant 0 : i32
    %c1_i32_11 = arith.constant 1 : i32
    %c0_i32_12 = arith.constant 0 : i32
    %9 = tpu.memref_slice %arg3[%c0_i32_10, %c1_i32_11, %c0_i32_12] : memref<2x9x128xf32, #tpu.memory_space<vmem>> -> memref<2x8x128xf32, #tpu.memory_space<vmem>>
    tpu.wait_dma2 semaphore(%arg4 : memref<!tpu.dma_semaphore, #tpu.memory_space<semaphore_mem>>) src(%8 : memref<2x8x128xf32, #tpu.memory_space<any>>) dst(%9 : memref<2x8x128xf32, #tpu.memory_space<vmem>>)
    return
  }
  func.func @transform_0(%arg0: i32) -> (i32, i32, i32) {
    %c0_i32 = arith.constant 0 : i32
    %c0_i32_0 = arith.constant 0 : i32
    %c0_i32_1 = arith.constant 0 : i32
    %c0_i32_2 = arith.constant 0 : i32
    return %c0_i32, %c0_i32_0, %c0_i32_1 : i32, i32, i32
  }
  func.func @transform_2(%arg0: i32) -> (i32, i32, i32) {
    %c0_i32 = arith.constant 0 : i32
    %c0_i32_0 = arith.constant 0 : i32
    %c0_i32_1 = arith.constant 0 : i32
    return %arg0, %c0_i32, %c0_i32_0 : i32, i32, i32
  }
}

</mosaic_0001>

<llo_original>
// kernel: tpu_custom_call.1
$region0: #{tpu_custom_call.1}
  #allocation0 [shape = 'u32[]', space=smem, size = 0x4, offset = 0x4, fixed_abs, tag = 'smem constant byte address 0x4 - core index']
  #allocation1 [shape = 'u32[144,128]{1,0:T(1,128)}', space=vmem, size = 0x12000, scoped, tag = 'internal scratch']
  #allocation2 [shape = 's32[1]{0}', space=sflag, size = 0x4, scoped, tag = 'scratch operand']
  #allocation5 [shape = 's32[]', space=sflag, size = 0x4, offset = 0, fixed_abs, tag = 'sflag constant byte address 0x0 - dummy sync flag']
  %s0 = inlined_call_operand.hbm [shape: f32[1,1,128], index: 0, kind: input, shape index: {}]
  %s1 = inlined_call_operand.hbm [shape: f32[2,8,128], index: 1, kind: input, shape index: {}]
  %s2 = inlined_call_operand.vmem [shape: f32[2,9,128], index: 2, kind: output, shape index: {}]
  %s3 = sld [smem:[#allocation0]]
  $region18: #{tpu_custom_call.1} parent=0
    _
  %s5 = ssub.s32 1, %s3
  %s6 = scalar_select 0, %s5, %s3
  $region1: #{tpu_custom_call.1} parent=0
    #allocation3 [shape = 'u8[512]{0}', space=vmem, size = 0x400, scoped, tag = 'input window, operand 0, single buffered']
    #allocation4 [shape = 's32[1]{0}', space=sflag, size = 0x4, scoped, tag = 'scoped memory for tpu_custom_call.1']
    %7 = vsyncpa [#allocation4], 0
    // Predicated region
    $region2: #{tpu_custom_call.1} parent=1 // pred_check
      _
    $region3: #{tpu_custom_call.1} parent=1 // pred_check_branch
      %9 = sbr.rel (0) target = $region5
    $region4: #{tpu_custom_call.1} parent=1 // pred_region
      %s11 = ssub.s32 16, 16
      %12 = vsyncadd [#allocation4], %s11
      %s14 = sshll.u32 [#allocation3], 4
      %s15 = int_to_ptr.vmem [resolvable:$true] %s14
      %17 = dma.hbm_to_vmem [thread:$0]  %s0, 16, %s15, [#allocation4]
    $region5: #{tpu_custom_call.1} parent=1 // pred_fallthru
      _
    // Predicated region
    $region6: #{tpu_custom_call.1} parent=1 // pred_check
      _
    $region7: #{tpu_custom_call.1} parent=1 // pred_check_branch
      %19 = sbr.rel (0) target = $region9
    $region8: #{tpu_custom_call.1} parent=1 // pred_region
      %20 = dma.done [#allocation4], 16
    $region9: #{tpu_custom_call.1} parent=1 // pred_fallthru
      _
    %s21 = smul.u32 0, 2
    %s22 = smul.u32 %s21, 8
    %s23 = smul.addr %s22, 16
    %s24 = scalar_lea.hbm %s1, %s23
    %s25 = scalar_lea.vmem %s2, 1
    %s27 = sshll.u32 %s25, 4
    %s28 = int_to_ptr.vmem [resolvable:$true] %s27
    %30 = dma.hbm_to_vmem [thread:$0]  %s24, 256, %s28, [#allocation2], 128, 256, 8
    %v31 = vld [vmem:[#allocation3] sm:$0x1]
    %32 = vst [vmem:[%s2] sm:$0x1] %v31
    %33 = vst [vmem:[%s2 + $0x10] sm:$0x1] %v31
    %s34 = smul.u32 2, 8
    %s35 = smul.u32 %s34, 1
    %s36 = sshll.u32 %s35, 4
    %37 = dma.done [#allocation2], %s36
    // Predicated region
    $region10: #{tpu_custom_call.1} parent=1 // pred_check
      _
    $region11: #{tpu_custom_call.1} parent=1 // pred_check_branch
      %39 = sbr.rel (0) target = $region13
    $region12: #{tpu_custom_call.1} parent=1 // pred_region
      _
    $region13: #{tpu_custom_call.1} parent=1 // pred_fallthru
      _
    // Predicated region
    $region14: #{tpu_custom_call.1} parent=1 // pred_check
      _
    $region15: #{tpu_custom_call.1} parent=1 // pred_check_branch
      %41 = sbr.rel (0) target = $region17
    $region16: #{tpu_custom_call.1} parent=1 // pred_region
      _
    $region17: #{tpu_custom_call.1} parent=1 // pred_fallthru
      _
    %42 = vsyncpa [#allocation4], 1
  %43 = vsyncmov [#allocation2]
  %s44 = vpop.sfrf %43
  %p45 = scmp.eq.s32.totalorder %s44, 0
  %p46 = pneg %p45
  %48 = shalt.err (%p46)

</llo_original>
